<compile_context>
chip_gen: v6e
topology: v6e:2x2x1
jax: 0.10.0
libtpu: 0.0.40
codegen_flags: <defaults>
</compile_context>

<pallas_src>
import jax
import jax.numpy as jnp
from jax.experimental import pallas as pl
from jax.experimental.pallas import tpu as pltpu


# --------------------------- hardware-aware budgets ---------------------------

def _vmem_capacity_bytes():
    """Physical VMEM per TensorCore (128 MiB v5e/v6e, 64 MiB v7x)."""
    try:
        info = pltpu.get_tpu_info()
        cap = getattr(info, "vmem_capacity_bytes", None)
        if cap:
            return int(cap)
    except Exception:
        pass
    return 64 * 1024 * 1024          # conservative fallback (v7x per-TC VMEM)


def _budgets():
    vmem = _vmem_capacity_bytes()
    tile_budget = vmem // 8          # per pipeline buffer: 16 MiB (128 MiB parts), 8 MiB (v7x)
    vmem_limit = (vmem * 3) // 4     # scoped Mosaic limit: 96 MiB / 48 MiB
    return tile_budget, int(vmem_limit)


def _choose_tile(total, unit, bytes_per_row, budget, vmem_limit):
    """Largest multiple of `unit` that divides `total` and fits `budget` bytes."""
    max_rows = max(1, budget // max(1, bytes_per_row))
    if max_rows >= total:
        return total
    t = (max_rows // unit) * unit
    while t >= unit:
        if total % t == 0:
            return t
        t -= unit
    # Fallback: one full block — but refuse to silently blow past the VMEM limit.
    if total * bytes_per_row * 2 > vmem_limit:
        raise ValueError(
            f"no row tile (unit={unit}) divides {total} under the VMEM budget; "
            "pad the batch to a size with a suitable divisor")
    return total


# ----------------------------- kernels ---------------------------------------

def _make_train_kernel(has_teacher):
    """Fused MXU head + grouped CE (+ optional teacher distillation)."""

    def kernel(*refs):
        if has_teacher:
            h_ref, w_ref, b_ref, t_ref, scores_ref, part_ref = refs
        else:
            h_ref, w_ref, b_ref, scores_ref, part_ref = refs
            t_ref = None

        # Block-diagonal classifier head on the MXU:
        #   hidden (tile_b, G*H) bf16  @  w_blk (G*H, G) bf16 -> grouped logits
        #   (tile_b, G), accumulated in f32.  Activations never upcast in VMEM.
        logits = jax.lax.dot_general(
            h_ref[...], w_ref[...],
            dimension_numbers=(((1,), (0,)), ((), ())),
            preferred_element_type=jnp.float32) + b_ref[0, 0]        # (tile_b, G)

        scores_ref[...] = logits

        # Grouped, max-stabilized log-softmax over candidates; target index 0.
        m = jnp.max(logits, axis=-1, keepdims=True)
        shifted = logits - m
        lse = jnp.log(jnp.sum(jnp.exp(shifted), axis=-1, keepdims=True))
        log_probs = shifted - lse                                    # (tile_b, G)

        part = jnp.sum(-log_probs[:, 0:1], axis=0, keepdims=True)    # (1, 1) CE sum

        if has_teacher:
            t = t_ref[...]                                           # (tile_b, G) f32
            tm = jnp.max(t, axis=-1, keepdims=True)
            te = jnp.exp(t - tm)
            tprob = te / jnp.sum(te, axis=-1, keepdims=True)
            distill = jnp.sum(-log_probs * tprob, axis=-1, keepdims=True)
            part = part + jnp.sum(distill, axis=0, keepdims=True)

        # Per-tile partial loss, broadcast across all 128 lanes (unmasked store).
        # Final `sum(partials) / B` happens in the wrapper -> grid axis is parallel.
        part_ref[...] = jnp.broadcast_to(part, part_ref.shape)

    return kernel


def _encode_scores_kernel(h_ref, w_ref, b_ref, scores_ref):
    """Inference path: MXU matvec, lane-dense (1, TILE_N) scores."""
    # (8, H) bf16  x  (TILE_N, H)^T bf16  ->  (8, TILE_N) f32; row 0 = logits.
    res = jax.lax.dot_general(
        w_ref[...], h_ref[...],
        dimension_numbers=(((1,), (1,)), ((), ())),
        preferred_element_type=jnp.float32)
    scores_ref[...] = res[0:1, :] + b_ref[0, 0]


# ----------------------------- pallas wrappers --------------------------------

def _pallas_fused_train(hidden, w, b_s, teacher, train_batch_size):
    N, H = hidden.shape
    B = train_batch_size
    G = N // B
    assert B * G == N, "N must be divisible by train_batch_size"
    has_teacher = teacher is not None

    # Dense 2-D view of the activations: one row per query group.
    h2 = hidden.reshape(B, G * H)                      # free metadata reshape

    # Block-diagonal bf16 classifier weight: w_blk[g*H + h, g] = w[h].
    w_col = jnp.asarray(w, jnp.float32).reshape(H).astype(jnp.bfloat16)
    w_blk = (jnp.eye(G, dtype=jnp.bfloat16)[:, None, :] *
             w_col[None, :, None]).reshape(G * H, G)

    tile_budget, vmem_limit = _budgets()
    # Per group-row bytes: bf16 hidden + f32 logits/scores/teacher + vreg padding.
    row_bytes = G * (H * hidden.dtype.itemsize + 16) + 512
    tile_b = _choose_tile(B, 8, row_bytes, tile_budget, vmem_limit)
    num_tiles = B // tile_b

    in_specs = [
        pl.BlockSpec((tile_b, G * H), lambda i: (i, 0)),             # hidden tile
        pl.BlockSpec((G * H, G), lambda i: (0, 0)),                  # bf16 weight
        pl.BlockSpec(memory_space=pltpu.MemorySpace.SMEM),           # bias scalar
    ]
    args = [h2, w_blk, b_s]
    if has_teacher:
        in_specs.append(pl.BlockSpec((tile_b, G), lambda i: (i, 0)))
        args.append(jnp.asarray(teacher, jnp.float32).reshape(B, G))

    out_shape = (jax.ShapeDtypeStruct((B, G), jnp.float32),
                 jax.ShapeDtypeStruct((1, num_tiles * 128), jnp.float32))
    out_specs = (pl.BlockSpec((tile_b, G), lambda i: (i, 0)),        # grouped scores
                 pl.BlockSpec((1, 128), lambda i: (0, i)))           # partial loss

    scores_bg, partials = pl.pallas_call(
        _make_train_kernel(has_teacher),
        grid=(num_tiles,),
        in_specs=in_specs,
        out_specs=out_specs,
        out_shape=out_shape,
        compiler_params=pltpu.CompilerParams(
            dimension_semantics=("parallel",),       # no resident accumulator
            vmem_limit_bytes=vmem_limit,
        ),
    )(*args)

    # Tiny host-side reduction of the per-tile partial sums (mean over groups).
    loss = jnp.sum(partials[0, ::128]) / B
    return loss, scores_bg


def _pallas_encode_scores(hidden, w, b_s):
    N, H = hidden.shape
    w_pad = jnp.zeros((8, H), jnp.bfloat16).at[0, :].set(
        jnp.asarray(w, jnp.float32).reshape(H).astype(jnp.bfloat16))

    tile_budget, vmem_limit = _budgets()
    row_bytes = H * hidden.dtype.itemsize + 64       # bf16 row + f32 result/score
    tile_n = _choose_tile(N, 128, row_bytes, tile_budget, vmem_limit)
    grid = (N // tile_n,)

    scores = pl.pallas_call(
        _encode_scores_kernel,
        grid=grid,
        in_specs=[
            pl.BlockSpec((tile_n, H), lambda i: (i, 0)),
            pl.BlockSpec((8, H), lambda i: (0, 0)),
            pl.BlockSpec(memory_space=pltpu.MemorySpace.SMEM),
        ],
        out_specs=pl.BlockSpec((1, tile_n), lambda i: (0, i)),       # lane-dense
        out_shape=jax.ShapeDtypeStruct((1, N), jnp.float32),
        compiler_params=pltpu.CompilerParams(
            dimension_semantics=("parallel",),
            vmem_limit_bytes=vmem_limit,
        ),
    )(hidden, w_pad, b_s)
    return scores[0]


def reranker_forward(hidden, w, b, teacher_scores=None, *, training=True,
                     train_batch_size=4):
    """Mirror of AbsRerankerModel.forward; returns (loss, scores)."""
    N, H = hidden.shape
    b_s = jnp.asarray(b, jnp.float32).reshape(1, 1)

    if not training:
        return None, _pallas_encode_scores(hidden, w, b_s)

    loss, scores_bg = _pallas_fused_train(hidden, w, b_s, teacher_scores,
                                          train_batch_size)
    return loss, scores_bg.reshape(N)


# ------------------------------ main ------------------------------------------

if __name__ == "__main__":
    B = 2      # train_batch_size
    G = 4      # candidates per query (positive at index 0)
    H = 32     # hidden size of the (stand-in) backbone
    N = B * G

    key = jax.random.PRNGKey(0)
    k_h, k_w, k_b, k_t = jax.random.split(key, 4)

    hidden = jax.random.normal(k_h, (N, H), dtype=jnp.float32).astype(jnp.bfloat16)
    w = jax.random.normal(k_w, (H, 1), dtype=jnp.float32) * 0.1
    b = jax.random.normal(k_b, (1, 1), dtype=jnp.float32) * 0.1
    teacher_scores = jax.random.normal(k_t, (N,), dtype=jnp.float32)

    # training with teacher distillation
    loss, scores = reranker_forward(hidden, w, b, teacher_scores,
                                    training=True, train_batch_size=B)
    # training without teacher
    loss_nt, scores_nt = reranker_forward(hidden, w, b, None,
                                          training=True, train_batch_size=B)
    # inference (scores only)
    _, scores_eval = reranker_forward(hidden, w, b, None,
                                      training=False, train_batch_size=B)
    loss, scores, loss_nt, scores_nt, scores_eval = jax.block_until_ready(
        (loss, scores, loss_nt, scores_nt, scores_eval))

    # ---- pure-JAX reference (same bf16 activations and bf16 classifier weight) --
    h32 = hidden.astype(jnp.float32)
    w_bf = jnp.asarray(w, jnp.float32).reshape(H).astype(jnp.bfloat16).astype(jnp.float32)
    logits_ref = jnp.dot(h32, w_bf) + b[0, 0]                          # (N,)
    grouped_ref = logits_ref.reshape(B, G)
    lp = jax.nn.log_softmax(grouped_ref, axis=-1)
    ce_ref = -jnp.mean(lp[:, 0])
    tt = jax.nn.softmax(teacher_scores.reshape(B, G), axis=-1)
    distill_ref = -jnp.mean(jnp.sum(lp * tt, axis=-1))
    loss_ref = ce_ref + distill_ref

    assert jnp.allclose(scores, logits_ref, rtol=1e-4, atol=1e-4), "scores mismatch"
    assert jnp.allclose(scores_nt, logits_ref, rtol=1e-4, atol=1e-4), "scores (no teacher) mismatch"
    assert jnp.allclose(scores_eval, logits_ref, rtol=1e-4, atol=1e-4), "eval scores mismatch"
    assert jnp.allclose(loss, loss_ref, rtol=1e-4, atol=1e-4), "loss mismatch"
    assert jnp.allclose(loss_nt, ce_ref, rtol=1e-4, atol=1e-4), "CE-only loss mismatch"

    print("KERNEL_OK")
</pallas_src>

<mosaic_0001>
module attributes {stable_mosaic.version = 11 : i64} {
  func.func @kernel(%arg0: i32, %arg1: memref<2x128xbf16, #tpu.memory_space<vmem>>, %arg2: memref<128x4xbf16, #tpu.memory_space<vmem>>, %arg3: memref<1x1xf32, #tpu.memory_space<smem>>, %arg4: memref<2x4xf32, #tpu.memory_space<vmem>>, %arg5: memref<2x4xf32, #tpu.memory_space<vmem>>, %arg6: memref<1x128xf32, #tpu.memory_space<vmem>>) attributes {dimension_semantics = [#tpu.dimension_semantics<parallel>], iteration_bounds = array<i64: 1>, scalar_prefetch = 0 : i64, scratch_operands = 0 : i64, tpu.core_type = #tpu.core_type<tc>, window_params = [{transform_indices = @transform_0, window_bounds = array<i64: 2, 128>}, {pipeline_mode = #tpu.pipeline_mode<synchronous>, transform_indices = @transform_1, window_bounds = array<i64: 128, 4>}, {transform_indices = @transform_2, window_bounds = array<i64: 1, 1>}, {transform_indices = @transform_3, window_bounds = array<i64: 2, 4>}, {transform_indices = @transform_4, window_bounds = array<i64: 2, 4>}, {transform_indices = @transform_5, window_bounds = array<i64: 1, 128>}]} {
    %c0 = arith.constant 0 : index
    %c0_0 = arith.constant 0 : index
    %0 = vector.load %arg1[%c0, %c0_0] : memref<2x128xbf16, #tpu.memory_space<vmem>>, vector<2x128xbf16>
    %c0_1 = arith.constant 0 : index
    %c0_2 = arith.constant 0 : index
    %1 = vector.load %arg2[%c0_1, %c0_2] : memref<128x4xbf16, #tpu.memory_space<vmem>>, vector<128x4xbf16>
    %cst = arith.constant dense<0.000000e+00> : vector<2x4xf32>
    %2 = tpu.matmul %0, %1, %cst {dimension_numbers = #tpu.dot_dimension_numbers<[1], [0], [0], [1], [0, 0, 1, 1], [], []>} : vector<2x128xbf16>, vector<128x4xbf16>, vector<2x4xf32> -> vector<2x4xf32>
    %c0_3 = arith.constant 0 : index
    %c0_4 = arith.constant 0 : index
    %3 = memref.load %arg3[%c0_3, %c0_4] : memref<1x1xf32, #tpu.memory_space<smem>>
    %4 = vector.broadcast %3 : f32 to vector<2x4xf32>
    %5 = arith.addf %2, %4 : vector<2x4xf32>
    %c0_5 = arith.constant 0 : index
    %c0_6 = arith.constant 0 : index
    %6 = vector.load %arg5[%c0_5, %c0_6] : memref<2x4xf32, #tpu.memory_space<vmem>>, vector<2x4xf32>
    tpu.vector_store %arg5[%c0_5, %c0_6], %5 {strides = array<i32>} : memref<2x4xf32, #tpu.memory_space<vmem>>, vector<2x4xf32>,
    %cst_7 = arith.constant dense<0xFF800000> : vector<2xf32>
    %7 = vector.multi_reduction <maximumf>, %5, %cst_7 [1] : vector<2x4xf32> to vector<2xf32>
    %8 = vector.shape_cast %7 : vector<2xf32> to vector<2x1xf32>
    %9 = vector.broadcast %8 : vector<2x1xf32> to vector<2x4xf32>
    %10 = arith.subf %5, %9 : vector<2x4xf32>
    %11 = math.exp %10 : vector<2x4xf32>
    %cst_8 = arith.constant dense<0.000000e+00> : vector<2xf32>
    %12 = vector.multi_reduction <add>, %11, %cst_8 [1] : vector<2x4xf32> to vector<2xf32>
    %13 = vector.shape_cast %12 : vector<2xf32> to vector<2x1xf32>
    %14 = math.log %13 : vector<2x1xf32>
    %15 = vector.broadcast %14 : vector<2x1xf32> to vector<2x4xf32>
    %16 = arith.subf %10, %15 : vector<2x4xf32>
    %17 = vector.extract_strided_slice %16 {offsets = [0, 0], sizes = [2, 1], strides = [1, 1]} : vector<2x4xf32> to vector<2x1xf32>
    %cst_9 = arith.constant 0.000000e+00 : f32
    %18 = vector.broadcast %cst_9 : f32 to vector<2x1xf32>
    %19 = arith.subf %18, %17 : vector<2x1xf32>
    %cst_10 = arith.constant dense<0.000000e+00> : vector<1xf32>
    %20 = vector.multi_reduction <add>, %19, %cst_10 [0] : vector<2x1xf32> to vector<1xf32>
    %21 = vector.shape_cast %20 : vector<1xf32> to vector<1x1xf32>
    %c0_11 = arith.constant 0 : index
    %c0_12 = arith.constant 0 : index
    %22 = vector.load %arg4[%c0_11, %c0_12] : memref<2x4xf32, #tpu.memory_space<vmem>>, vector<2x4xf32>
    %cst_13 = arith.constant dense<0xFF800000> : vector<2xf32>
    %23 = vector.multi_reduction <maximumf>, %22, %cst_13 [1] : vector<2x4xf32> to vector<2xf32>
    %24 = vector.shape_cast %23 : vector<2xf32> to vector<2x1xf32>
    %25 = vector.broadcast %24 : vector<2x1xf32> to vector<2x4xf32>
    %26 = arith.subf %22, %25 : vector<2x4xf32>
    %27 = math.exp %26 : vector<2x4xf32>
    %cst_14 = arith.constant dense<0.000000e+00> : vector<2xf32>
    %28 = vector.multi_reduction <add>, %27, %cst_14 [1] : vector<2x4xf32> to vector<2xf32>
    %29 = vector.shape_cast %28 : vector<2xf32> to vector<2x1xf32>
    %30 = vector.broadcast %29 : vector<2x1xf32> to vector<2x4xf32>
    %31 = arith.divf %27, %30 : vector<2x4xf32>
    %cst_15 = arith.constant 0.000000e+00 : f32
    %32 = vector.broadcast %cst_15 : f32 to vector<2x4xf32>
    %33 = arith.subf %32, %16 : vector<2x4xf32>
    %34 = arith.mulf %33, %31 : vector<2x4xf32>
    %cst_16 = arith.constant dense<0.000000e+00> : vector<2xf32>
    %35 = vector.multi_reduction <add>, %34, %cst_16 [1] : vector<2x4xf32> to vector<2xf32>
    %36 = vector.shape_cast %35 : vector<2xf32> to vector<2x1xf32>
    %cst_17 = arith.constant dense<0.000000e+00> : vector<1xf32>
    %37 = vector.multi_reduction <add>, %36, %cst_17 [0] : vector<2x1xf32> to vector<1xf32>
    %38 = vector.shape_cast %37 : vector<1xf32> to vector<1x1xf32>
    %39 = arith.addf %21, %38 : vector<1x1xf32>
    %40 = vector.shape_cast %39 : vector<1x1xf32> to vector<1x1xf32>
    %41 = vector.broadcast %40 : vector<1x1xf32> to vector<1x128xf32>
    %c0_18 = arith.constant 0 : index
    %c0_19 = arith.constant 0 : index
    %42 = vector.load %arg6[%c0_18, %c0_19] : memref<1x128xf32, #tpu.memory_space<vmem>>, vector<1x128xf32>
    tpu.vector_store %arg6[%c0_18, %c0_19], %41 {strides = array<i32>} : memref<1x128xf32, #tpu.memory_space<vmem>>, vector<1x128xf32>,
    return
  }
  func.func @transform_0(%arg0: i32) -> (i32, i32) {
    %c0_i32 = arith.constant 0 : i32
    %c0_i32_0 = arith.constant 0 : i32
    return %arg0, %c0_i32 : i32, i32
  }
  func.func @transform_1(%arg0: i32) -> (i32, i32) {
    %c0_i32 = arith.constant 0 : i32
    %c0_i32_0 = arith.constant 0 : i32
    %c0_i32_1 = arith.constant 0 : i32
    return %c0_i32, %c0_i32_0 : i32, i32
  }
  func.func @transform_2(%arg0: i32) -> (i32, i32) {
    %c0_i32 = arith.constant 0 : i32
    %c0_i32_0 = arith.constant 0 : i32
    %c0_i32_1 = arith.constant 0 : i32
    return %c0_i32, %c0_i32_0 : i32, i32
  }
  func.func @transform_3(%arg0: i32) -> (i32, i32) {
    %c0_i32 = arith.constant 0 : i32
    %c0_i32_0 = arith.constant 0 : i32
    return %arg0, %c0_i32 : i32, i32
  }
  func.func @transform_4(%arg0: i32) -> (i32, i32) {
    %c0_i32 = arith.constant 0 : i32
    %c0_i32_0 = arith.constant 0 : i32
    return %arg0, %c0_i32 : i32, i32
  }
  func.func @transform_5(%arg0: i32) -> (i32, i32) {
    %c0_i32 = arith.constant 0 : i32
    %c0_i32_0 = arith.constant 0 : i32
    return %c0_i32, %arg0 : i32, i32
  }
}

</mosaic_0001>

<llo_original>
// kernel: tpu_custom_call.1
$region0: #{tpu_custom_call.1}
  #allocation0 [shape = 'u32[]', space=smem, size = 0x4, offset = 0x4, fixed_abs, tag = 'smem constant byte address 0x4 - core index']
  #allocation1 [shape = 'u32[144,128]{1,0:T(1,128)}', space=vmem, size = 0x12000, scoped, tag = 'internal scratch']
  #allocation2 [shape = 'f32[1,1]{1,0:T(1,128)S(6)}', space=smem, size = 0x200, scoped, tag = 'scoped memory for tpu_custom_call.1']
  %s0 = inlined_call_operand.vmem [shape: bf16[2,128], index: 0, kind: input, shape index: {}]
  %s1 = inlined_call_operand.vmem [shape: bf16[128,4], index: 1, kind: input, shape index: {}]
  %s2 = inlined_call_operand.<no memory space> [shape: f32[1,1], index: 2, kind: input, shape index: {}]
  %s3 = inlined_call_operand.vmem [shape: f32[2,4], index: 3, kind: input, shape index: {}]
  %s4 = inlined_call_operand.hbm [shape: f32[2,4], index: 4, kind: output, shape index: {0}]
  %s5 = inlined_call_operand.hbm [shape: f32[1,128], index: 5, kind: output, shape index: {1}]
  %6 = xla_tuple %s4, %s5
  %s7 = sld [smem:[#allocation0]]
  $region34: #{tpu_custom_call.1} parent=0
    _
  %s9 = ssub.s32 1, %s7
  %s10 = scalar_select 0, %s9, %s7
  %11 = sst [smem:[#allocation2]] %s2
  $region1: #{tpu_custom_call.1} parent=0
    #allocation3 [shape = 'u8[1024]{0}', space=vmem, size = 0x400, scoped, tag = 'output window, operand 0, single buffered']
    #allocation4 [shape = 's32[1]{0}', space=sflag, size = 0x4, scoped, tag = 'scoped memory for tpu_custom_call.1']
    #allocation5 [shape = 'u8[512]{0}', space=vmem, size = 0x400, scoped, tag = 'output window, operand 1, single buffered']
    #allocation6 [shape = 's32[1]{0}', space=sflag, size = 0x4, scoped, tag = 'scoped memory for tpu_custom_call.1']
    %12 = vsyncpa [#allocation4], 0
    %13 = vsyncpa [#allocation6], 0
    // Predicated region
    $region2: #{tpu_custom_call.1} parent=1 // pred_check
      _
    $region3: #{tpu_custom_call.1} parent=1 // pred_check_branch
      %15 = sbr.rel (0) target = $region5
    $region4: #{tpu_custom_call.1} parent=1 // pred_region
      _
    $region5: #{tpu_custom_call.1} parent=1 // pred_fallthru
      _
    // Predicated region
    $region6: #{tpu_custom_call.1} parent=1 // pred_check
      _
    $region7: #{tpu_custom_call.1} parent=1 // pred_check_branch
      %17 = sbr.rel (0) target = $region9
    $region8: #{tpu_custom_call.1} parent=1 // pred_region
      _
    $region9: #{tpu_custom_call.1} parent=1 // pred_fallthru
      _
    // Predicated region
    $region10: #{tpu_custom_call.1} parent=1 // pred_check
      _
    $region11: #{tpu_custom_call.1} parent=1 // pred_check_branch
      %19 = sbr.rel (0) target = $region13
    $region12: #{tpu_custom_call.1} parent=1 // pred_region
      _
    $region13: #{tpu_custom_call.1} parent=1 // pred_fallthru
      _
    // Predicated region
    $region14: #{tpu_custom_call.1} parent=1 // pred_check
      _
    $region15: #{tpu_custom_call.1} parent=1 // pred_check_branch
      %21 = sbr.rel (0) target = $region17
    $region16: #{tpu_custom_call.1} parent=1 // pred_region
      _
    $region17: #{tpu_custom_call.1} parent=1 // pred_fallthru
      _
    %v23 = vld [vmem:[%s0] sm:$0x1]
    %v24 = vld [vmem:[%s1] sm:$0xf]
    %v25 = vld [vmem:[%s1 + $0x4] sm:$0xf]
    %v26 = vld [vmem:[%s1 + $0x8] sm:$0xf]
    %v27 = vld [vmem:[%s1 + $0xc] sm:$0xf]
    %v28 = vld [vmem:[%s1 + $0x10] sm:$0xf]
    %v29 = vld [vmem:[%s1 + $0x14] sm:$0xf]
    %v30 = vld [vmem:[%s1 + $0x18] sm:$0xf]
    %v31 = vld [vmem:[%s1 + $0x1c] sm:$0xf]
    %v32 = vld [vmem:[%s1 + $0x20] sm:$0xf]
    %v33 = vld [vmem:[%s1 + $0x24] sm:$0xf]
    %v34 = vld [vmem:[%s1 + $0x28] sm:$0xf]
    %v35 = vld [vmem:[%s1 + $0x2c] sm:$0xf]
    %v36 = vld [vmem:[%s1 + $0x30] sm:$0xf]
    %v37 = vld [vmem:[%s1 + $0x34] sm:$0xf]
    %v38 = vld [vmem:[%s1 + $0x38] sm:$0xf]
    %v39 = vld [vmem:[%s1 + $0x3c] sm:$0xf]
    %s40 = sld [smem:[#allocation2]]
    %v41 = vstv %s40
    %v58 = vunpack.c.l.b16 %v24
    %v59 = vunpack.c.l.b16 %v25
    %v60 = vunpack.c.l.b16 %v26
    %v61 = vunpack.c.l.b16 %v27
    %v62 = vunpack.c.l.b16 %v28
    %v63 = vunpack.c.l.b16 %v29
    %v64 = vunpack.c.l.b16 %v30
    %v65 = vunpack.c.l.b16 %v31
    %v66 = vunpack.c.l.b16 %v32
    %v67 = vunpack.c.l.b16 %v33
    %v68 = vunpack.c.l.b16 %v34
    %v69 = vunpack.c.l.b16 %v35
    %v70 = vunpack.c.l.b16 %v36
    %v71 = vunpack.c.l.b16 %v37
    %v72 = vunpack.c.l.b16 %v38
    %v73 = vunpack.c.l.b16 %v39
    %v74 = vpack.c.b16 %v59, %v58
    %v75 = vpack.c.b16 %v61, %v60
    %v76 = vpack.c.b16 %v63, %v62
    %v77 = vpack.c.b16 %v65, %v64
    %v78 = vpack.c.b16 %v67, %v66
    %v79 = vpack.c.b16 %v69, %v68
    %v80 = vpack.c.b16 %v71, %v70
    %v81 = vpack.c.b16 %v73, %v72
    %90 = vmatprep.subr.bf16.mxu0 0
    %91 = vmatpush1.bf16.msra.mxu0 %v81
    %92 = vmatprep.subr.bf16.mxu0 0
    %93 = vmatpush1.bf16.msra.mxu0 %v80
    %94 = vmatprep.subr.bf16.mxu0 0
    %95 = vmatpush1.bf16.msra.mxu0 %v79
    %96 = vmatprep.subr.bf16.mxu0 0
    %97 = vmatpush1.bf16.msra.mxu0 %v78
    %98 = vmatprep.subr.bf16.mxu0 0
    %99 = vmatpush1.bf16.msra.mxu0 %v77
    %100 = vmatprep.subr.bf16.mxu0 0
    %101 = vmatpush1.bf16.msra.mxu0 %v76
    %102 = vmatprep.subr.bf16.mxu0 0
    %103 = vmatpush1.bf16.msra.mxu0 %v75
    %104 = vmatprep.subr.bf16.mxu0 0
    %105 = vmatpush1.bf16.msra.mxu0 %v74
    %106 = vmatprep.subr.bf16.mxu0 0
    %107 = vmatpush2.bf16.msra.mxu0 0
    %108 = vmatprep.subr.bf16.mxu0 0
    %109 = vmatpush2.bf16.msra.mxu0 0
    %110 = vmatprep.subr.bf16.mxu0 0
    %111 = vmatpush2.bf16.msra.mxu0 0
    %112 = vmatprep.subr.bf16.mxu0 0
    %113 = vmatpush2.bf16.msra.mxu0 0
    %114 = vmatprep.subr.bf16.mxu0 0
    %115 = vmatpush2.bf16.msra.mxu0 0
    %116 = vmatprep.subr.bf16.mxu0 0
    %117 = vmatpush2.bf16.msra.mxu0 0
    %118 = vmatprep.subr.bf16.mxu0 0
    %119 = vmatpush2.bf16.msra.mxu0 0
    %120 = vmatprep.subr.bf16.mxu0 0
    %121 = vmatpush2.bf16.msra.mxu0 0
    %122 = vmatprep.mubr.bf16.mxu0 0
    %123 = vmatmul.mubr.bf16.gmra.mxu0 %v23
    %v124 = vpop.f32.mrf.mxu0
    %v125 = vadd.f32 %v41, %v124
    %v126 = vpop.f32.mrf.mxu0
    %v127 = vpop.f32.mrf.mxu0
    %v128 = vpop.f32.mrf.mxu0
    %129 = vdwg.mxu0
    %vm130 = vcmask 25600
    %131 = vst.msk [vmem:[#allocation3] sm:$0x3] %vm130, %v125
    %v132 = vsel %vm130, %v125, -inf
    %133 = vmax.xlane.f32.xlu0 %v132
    %v134 = vpop.xlane.xlu0 %133
    %v135 = vsub.f32 %v125, %v134
    %v136 = vmul.f32 %v135, 1.442695
    %v137 = vpow.pop %v136
    %v138 = vsel %vm130, %v137, 0.0
    %139 = vadd.xlane.f32.xlu0 %v138
    %v140 = vpop.xlane.xlu0 %139
    %v141 = vlog2.pop %v140
    %v142 = vmul.f32 %v141, 0.6931472
    %v143 = vsub.f32 %v135, %v142
    %v144 = vsub.f32 0.0, %v143
    %vm145 = vcmask 1024
    %v146 = vsel %vm145, %v144, 0.0
    %v147 = vrot.slane %v146, 4
    %v148 = vadd.f32 %v146, %v147
    %v149 = vrot.slane %v148, 2
    %v150 = vadd.f32 %v148, %v149
    %v151 = vrot.slane %v150, 1
    %v152 = vadd.f32 %v150, %v151
    %v153 = vld [vmem:[%s3] sm:$0x3]
    %v154 = vsel %vm130, %v153, -inf
    %155 = vmax.xlane.f32.xlu0 %v154
    %v156 = vpop.xlane.xlu0 %155
    %v157 = vsub.f32 %v153, %v156
    %v158 = vmul.f32 %v157, 1.442695
    %v159 = vpow.pop %v158
    %v160 = vsel %vm130, %v159, 0.0
    %161 = vadd.xlane.f32.xlu0 %v160
    %v162 = vpop.xlane.xlu0 %161
    %v163 = vrcp.pop %v162
    %v164 = vmul.f32 %v159, %v163
    %v165 = vmul.f32 %v144, %v164
    %v166 = vsel %vm130, %v165, 0.0
    %167 = vadd.xlane.f32.xlu0 %v166
    %v168 = vpop.xlane.xlu0 %167
    %vm169 = vcmask 1041408
    %v170 = vsel %vm169, %v168, 0.0
    %v171 = vrot.slane %v170, 4
    %v172 = vadd.f32 %v170, %v171
    %v173 = vrot.slane %v172, 2
    %v174 = vadd.f32 %v172, %v173
    %v175 = vrot.slane %v174, 1
    %v176 = vadd.f32 %v174, %v175
    %v177 = vadd.f32 %v152, %v176
    %179 = vset.pattern.permute.xlu0 0
    %180 = vperm.xlu0 %179, %v177
    %v181 = vpop.permute.xlu0 %180
    %183 = vst [vmem:[#allocation5] sm:$0x1] %v181
    // Predicated region
    $region18: #{tpu_custom_call.1} parent=1 // pred_check
      _
    $region19: #{tpu_custom_call.1} parent=1 // pred_check_branch
      %185 = sbr.rel (0) target = $region21
    $region20: #{tpu_custom_call.1} parent=1 // pred_region
      %s187 = ssub.s32 32, 32
      %188 = vsyncadd [#allocation4], %s187
      %s190 = sshll.u32 [#allocation3], 4
      %s191 = int_to_ptr.vmem [resolvable:$true] %s190
      %193 = dma.vmem_to_hbm [thread:$0]  %s191, 32, %s4, [#allocation4]
    $region21: #{tpu_custom_call.1} parent=1 // pred_fallthru
      _
    // Predicated region
    $region22: #{tpu_custom_call.1} parent=1 // pred_check
      _
    $region23: #{tpu_custom_call.1} parent=1 // pred_check_branch
      %195 = sbr.rel (0) target = $region25
    $region24: #{tpu_custom_call.1} parent=1 // pred_region
      %s197 = ssub.s32 16, 16
      %198 = vsyncadd [#allocation6], %s197
      %s200 = sshll.u32 [#allocation5], 4
      %s201 = int_to_ptr.vmem [resolvable:$true] %s200
      %203 = dma.vmem_to_hbm [thread:$0]  %s201, 16, %s5, [#allocation6]
    $region25: #{tpu_custom_call.1} parent=1 // pred_fallthru
      _
    // Predicated region
    $region26: #{tpu_custom_call.1} parent=1 // pred_check
      _
    $region27: #{tpu_custom_call.1} parent=1 // pred_check_branch
      %205 = sbr.rel (0) target = $region29
    $region28: #{tpu_custom_call.1} parent=1 // pred_region
      %206 = dma.done [#allocation4], 32
    $region29: #{tpu_custom_call.1} parent=1 // pred_fallthru
      _
    // Predicated region
    $region30: #{tpu_custom_call.1} parent=1 // pred_check
      _
    $region31: #{tpu_custom_call.1} parent=1 // pred_check_branch
      %208 = sbr.rel (0) target = $region33
    $region32: #{tpu_custom_call.1} parent=1 // pred_region
      %209 = dma.done [#allocation6], 16
    $region33: #{tpu_custom_call.1} parent=1 // pred_fallthru
      _
    %210 = vsyncpa [#allocation4], 1
    %211 = vsyncpa [#allocation6], 1

</llo_original>
